<compile_context>
chip_gen: v6e
topology: v6e:2x2x1
jax: 0.10.0
libtpu: 0.0.40
codegen_flags: <defaults>
</compile_context>

<pallas_src>
import numpy as np
import jax
import jax.numpy as jnp
from jax.experimental import pallas as pl
from jax.experimental.pallas import tpu as pltpu


# ----------------------------------------------------------------------------
# Scalar path: one parameter, SMEM-only, input aliased to output.
# ----------------------------------------------------------------------------
def _scalar_copy_kernel(p_ref, o_ref):
    # Entire forward pass: copy the scalar parameter into the (1,) output.
    # (p_ref and o_ref alias the same buffer; the store keeps the kernel
    #  well-formed and is a no-op in practice.)
    o_ref[0] = p_ref[0]


_scalar_forward_call = pl.pallas_call(
    _scalar_copy_kernel,
    out_shape=jax.ShapeDtypeStruct((1,), jnp.float32),
    in_specs=[pl.BlockSpec(memory_space=pltpu.MemorySpace.SMEM)],
    out_specs=pl.BlockSpec(memory_space=pltpu.MemorySpace.SMEM),
    input_output_aliases={0: 0},
)


@jax.custom_vjp
def _scalar_forward(p1):            # p1: f32[1]
    return _scalar_forward_call(p1)


def _scalar_forward_fwd(p1):
    return _scalar_forward_call(p1), None


def _scalar_forward_bwd(_, g):
    return (g,)                     # identity gradient


_scalar_forward.defvjp(_scalar_forward_fwd, _scalar_forward_bwd)


@jax.jit
def continuous_parameter_forward(param_scalar: jax.Array) -> jax.Array:
    """Equivalent of ContinuousParameter.forward(): scalar -> shape (1,)."""
    p = jnp.asarray(param_scalar, jnp.float32).reshape(1)
    return _scalar_forward(p)


# ----------------------------------------------------------------------------
# Batched path: N parameters -> one launch, (N, 1) in, (N, 1) out, aliased.
# ----------------------------------------------------------------------------
def _batched_copy_kernel(p_ref, o_ref):
    o_ref[...] = p_ref[...]


def _batched_forward_call(p):       # p: f32[N, 1]
    return pl.pallas_call(
        _batched_copy_kernel,
        out_shape=jax.ShapeDtypeStruct(p.shape, jnp.float32),
        # Full-extent block == whole array: exempt from (8,128) divisibility.
        in_specs=[pl.BlockSpec(memory_space=pltpu.MemorySpace.VMEM)],
        out_specs=pl.BlockSpec(memory_space=pltpu.MemorySpace.VMEM),
        input_output_aliases={0: 0},
    )(p)


@jax.custom_vjp
def _batched_forward(p):
    return _batched_forward_call(p)


def _batched_forward_fwd(p):
    return _batched_forward_call(p), None


def _batched_forward_bwd(_, g):
    return (g,)                     # identity gradient


_batched_forward.defvjp(_batched_forward_fwd, _batched_forward_bwd)


@jax.jit
def continuous_parameters_forward(params: jax.Array) -> jax.Array:
    """Batched forward for N ContinuousParameters: (N,) -> (N, 1).

    Convention: row i equals module i's forward() output (shape (1,)),
    stacked along a new leading axis. No padding / slicing passes — the
    (N,) -> (N, 1) reshape is metadata-only and fuses under this jit.
    """
    p = jnp.asarray(params, jnp.float32).reshape(-1, 1)
    return _batched_forward(p)


# ----------------------------------------------------------------------------
# Module wrapper (JAX port of modules/optimization_helpers.py:ContinuousParameter)
# ----------------------------------------------------------------------------
class ContinuousParameterJax:
    """Minimal JAX port of ContinuousParameter."""

    def __init__(self, current_value: float, min_value=np.nan, max_value=np.nan,
                 sigma: float = 1.0, cost=None):
        self.starting_value = jnp.asarray(current_value, dtype=jnp.float32)
        # TODO(synk): plain jnp scalar stands in for torch.nn.Parameter; thread
        # it through an optimizer's param pytree explicitly for training.
        self.parameter = self.starting_value
        self.min_value = float(np.nan_to_num(min_value, nan=-100000000000.0))
        self.max_value = float(np.nan_to_num(max_value, nan=100000000000.0))
        self.boundaries = jnp.asarray(
            np.array([self.min_value, self.max_value], dtype="float32"))
        self.sigma = np.array(sigma)
        self._cost = cost if cost is not None else 0.0

    def forward(self) -> jax.Array:
        # Matches torch: forward() does NOT clamp to [min_value, max_value].
        return continuous_parameter_forward(self.parameter)

    @property
    def current_value(self):
        return self.parameter

    @property
    def physical_value(self):
        # NOTE: forces a device->host transfer (like torch .item()); keep off
        # hot paths / cache if queried per optimization step.
        return float(self.parameter)

    @property
    def cost(self):
        return self.physical_value * self._cost


if __name__ == "__main__":
    key = jax.random.PRNGKey(0)
    k_scalar, k_batch = jax.random.split(key)

    # --- single ContinuousParameter (scalar SMEM kernel) ---------------------
    start_val = jnp.asarray(
        jax.random.uniform(k_scalar, (), minval=-1.0, maxval=1.0), jnp.float32)
    module = ContinuousParameterJax(
        current_value=float(start_val), min_value=-5.0, max_value=5.0,
        sigma=0.1, cost=2.0)

    out = jax.block_until_ready(module.forward())
    ref = np.expand_dims(np.float32(start_val), 0)
    assert out.shape == (1,), out.shape
    assert out.dtype == jnp.float32, out.dtype
    np.testing.assert_allclose(np.asarray(out), ref, rtol=0, atol=0)

    # forward() is differentiable w.r.t. the parameter (identity gradient).
    g = jax.block_until_ready(
        jax.grad(lambda v: continuous_parameter_forward(v)[0])(start_val))
    np.testing.assert_allclose(np.asarray(g), 1.0, rtol=0, atol=0)

    # --- batched path: many parameters, one launch ----------------------------
    n_params = 5
    vals = jnp.asarray(
        jax.random.uniform(k_batch, (n_params,), minval=-1.0, maxval=1.0),
        jnp.float32)
    batched = jax.block_until_ready(continuous_parameters_forward(vals))
    ref_b = np.asarray(vals, np.float32).reshape(n_params, 1)
    assert batched.shape == (n_params, 1), batched.shape
    assert batched.dtype == jnp.float32, batched.dtype
    np.testing.assert_allclose(np.asarray(batched), ref_b, rtol=0, atol=0)

    gb = jax.block_until_ready(
        jax.grad(lambda v: continuous_parameters_forward(v).sum())(vals))
    np.testing.assert_allclose(np.asarray(gb), np.ones(n_params, np.float32),
                               rtol=0, atol=0)

    print("KERNEL_OK")
</pallas_src>

<mosaic_0001>
module attributes {stable_mosaic.version = 11 : i64} {
  func.func @_scalar_copy_kernel(%arg0: memref<1xf32, #tpu.memory_space<smem>>, %arg1: memref<1xf32, #tpu.memory_space<smem>>) attributes {dimension_semantics = [], scalar_prefetch = 0 : i64, scratch_operands = 0 : i64, tpu.core_type = #tpu.core_type<tc>} {
    %c0 = arith.constant 0 : index
    %0 = memref.load %arg0[%c0] : memref<1xf32, #tpu.memory_space<smem>>
    %c0_0 = arith.constant 0 : index
    %1 = memref.load %arg1[%c0_0] : memref<1xf32, #tpu.memory_space<smem>>
    memref.store %0, %arg1[%c0_0] : memref<1xf32, #tpu.memory_space<smem>>
    return
  }
}

</mosaic_0001>

<llo_original>
// kernel: continuous_parameter_forward.1
$region0: #{continuous_parameter_forward.1}
  #allocation0 [shape = 'u32[]', space=smem, size = 0x4, offset = 0x4, fixed_abs, tag = 'smem constant byte address 0x4 - core index']
  #allocation1 [shape = 'u32[144,128]{1,0:T(1,128)}', space=vmem, size = 0x12000, scoped, tag = 'internal scratch']
  #allocation2 [shape = 'f32[1]{0:T(128)S(6)}', space=smem, size = 0x200, scoped, tag = 'scoped memory for continuous_parameter_forward.1']
  %s0 = inlined_call_operand.<no memory space> [shape: f32[1], index: 0, kind: input, shape index: {}, may-alias: {0,1}]
  %s1 = inlined_call_operand.hbm [shape: f32[1], index: 1, kind: output, shape index: {}, may-alias: {0,1}]
  %s2 = sld [smem:[#allocation0]]
  $region14: #{continuous_parameter_forward.1} parent=0
    _
  %s4 = ssub.s32 1, %s2
  %s5 = scalar_select 0, %s4, %s2
  %6 = sst [smem:[#allocation2]] %s0
  $region1: #{continuous_parameter_forward.1} parent=0
    #allocation3 [shape = 'u8[512]{0}', space=smem, size = 0x200, scoped, tag = 'output window, operand 0, single buffered']
    #allocation4 [shape = 's32[1]{0}', space=sflag, size = 0x4, scoped, tag = 'scoped memory for continuous_parameter_forward.1']
    %7 = vsyncpa [#allocation4], 0
    // Predicated region
    $region2: #{continuous_parameter_forward.1} parent=1 // pred_check
      _
    $region3: #{continuous_parameter_forward.1} parent=1 // pred_check_branch
      %9 = sbr.rel (0) target = $region5
    $region4: #{continuous_parameter_forward.1} parent=1 // pred_region
      _
    $region5: #{continuous_parameter_forward.1} parent=1 // pred_fallthru
      _
    %s10 = sld [smem:[#allocation2]]
    %s11 = scalar_lea.smem [#allocation3], 0
    %12 = sst [smem:[%s11]] %s10
    // Predicated region
    $region6: #{continuous_parameter_forward.1} parent=1 // pred_check
      _
    $region7: #{continuous_parameter_forward.1} parent=1 // pred_check_branch
      %14 = sbr.rel (0) target = $region9
    $region8: #{continuous_parameter_forward.1} parent=1 // pred_region
      %s16 = ssub.s32 16, 16
      %17 = vsyncadd [#allocation4], %s16
      %20 = dma.smem_to_hbm [#allocation3], 16, %s1, [#allocation4]
    $region9: #{continuous_parameter_forward.1} parent=1 // pred_fallthru
      _
    // Predicated region
    $region10: #{continuous_parameter_forward.1} parent=1 // pred_check
      _
    $region11: #{continuous_parameter_forward.1} parent=1 // pred_check_branch
      %22 = sbr.rel (0) target = $region13
    $region12: #{continuous_parameter_forward.1} parent=1 // pred_region
      %23 = dma.done [#allocation4], 16
    $region13: #{continuous_parameter_forward.1} parent=1 // pred_fallthru
      _
    %24 = sfence
    %25 = vsyncpa [#allocation4], 1

</llo_original>
